<compile_context>
chip_gen: v7x
topology: tpu7x:2x2x1
jax: 0.10.0
libtpu: 0.0.40
codegen_flags: <defaults>
</compile_context>

<pallas_src>
import functools

import jax
import jax.numpy as jnp
from jax.experimental import pallas as pl
from jax.experimental.pallas import tpu as pltpu

_LANES = 128                      # TPU lane width; feature dims padded to this
_VMEM_LIMIT = 48 * 1024 * 1024    # safe on v5e/v6e (128 MiB) and v7x (64 MiB)
_NEG_INF = -1e9


def _round_up(v, m):
    return ((v + m - 1) // m) * m


# ------------------------------------------------------------------ kernels

def _project_kernel(x_ref, w_ref, att_ref, h_ref, acat_ref):
    """H = X @ W and fused attention logits, all lane-dense.

    x_ref:    [tb, f_in_pad]  f32
    w_ref:    [f_in_pad, 128] f32  (resident)
    att_ref:  [128, 128]      f32  (resident; col0 = att_src, col1 = att_dst)
    h_ref:    [tb, 128]       bf16 (bf16 operand for pass 2's MXU aggregation)
    acat_ref: [tb, 128]       f32  (col0 = a_src, col1 = a_dst, rest zero)
    """
    h = jnp.dot(x_ref[...], w_ref[...], preferred_element_type=jnp.float32)
    h_ref[...] = h.astype(jnp.bfloat16)
    acat_ref[...] = jnp.dot(h, att_ref[...], preferred_element_type=jnp.float32)


def _attn_kernel(mask_ref, acat_ref, h_ref, asrc_ref, bias_ref, out_ref,
                 m_sc, l_sc, acc_sc, *, apply_relu, negative_slope):
    """Online-softmax masked attention + aggregation + bias (+ fused ReLU).

    Grid = (target tiles i ["parallel"], source tiles k ["arbitrary"]).
    mask_ref: [tb, tn]  bf16 additive mask (0 on edges / self loops, -1e9 else)
    acat_ref: [tb, 128] f32  (col1 = a_dst for this target tile; fixed over k)
    h_ref:    [tn, 128] bf16 source-node features
    asrc_ref: [1,  tn]  f32  lane-dense a_src row slice
    bias_ref: [1, 128]  f32  (resident)
    out_ref:  [tb, 128] f32
    """
    k = pl.program_id(1)

    @pl.when(k == 0)
    def _():
        m_sc[...] = jnp.full(m_sc.shape, -jnp.inf, jnp.float32)
        l_sc[...] = jnp.zeros(l_sc.shape, jnp.float32)
        acc_sc[...] = jnp.zeros(acc_sc.shape, jnp.float32)

    a_dst = acat_ref[:, 1:2]                                   # [tb, 1]
    s = a_dst + asrc_ref[...]                                  # [tb, tn]
    s = jnp.where(s > 0, s, negative_slope * s)                # LeakyReLU
    s = s + mask_ref[...].astype(jnp.float32)                  # additive mask

    m_prev = m_sc[...]
    m_new = jnp.maximum(m_prev, jnp.max(s, axis=-1, keepdims=True))
    alpha = jnp.exp(m_prev - m_new)
    p = jnp.exp(s - m_new)                                     # unnormalized
    l_sc[...] = alpha * l_sc[...] + jnp.sum(p, axis=-1, keepdims=True)
    # bf16 operands, f32 accumulation; softmax normalization deferred past MXU.
    acc_sc[...] = alpha * acc_sc[...] + jnp.dot(
        p.astype(jnp.bfloat16), h_ref[...], preferred_element_type=jnp.float32)
    m_sc[...] = m_new

    @pl.when(k == pl.num_programs(1) - 1)
    def _():
        out = acc_sc[...] * pl.reciprocal(l_sc[...], approx=True)  # EUP slot
        out = out + bias_ref[...]
        if apply_relu:
            out = jnp.maximum(out, 0.0)
        out_ref[...] = out.astype(out_ref.dtype)


# ------------------------------------------------------------------ wrappers

def _pick_tiles(n_pad):
    """VMEM-aware tile sizes for the (target, source) node axes."""
    # Source-axis tile = lane dim of the mask block: multiple of 128.
    tn = n_pad if n_pad <= 512 else 512
    while n_pad % tn:
        tn -= _LANES
    # Target-axis tile = sublane dim: multiple of 8, sized so the
    # double-buffered streamed blocks + scratch stay well under the scoped
    # VMEM limit (and under v7x's 64 MiB physical VMEM).
    budget = 12 * 1024 * 1024

    def vmem_bytes(tb):
        return (2 * tb * tn * 2          # mask (bf16), double-buffered
                + 2 * tb * _LANES * 4    # a_cat block
                + 2 * tn * _LANES * 2    # H block (bf16)
                + 2 * tn * 4             # a_src row slice
                + 2 * tb * _LANES * 4    # output block
                + tb * _LANES * 4 + 2 * tb * 4)   # acc / m / l scratch

    tb = min(n_pad, 1024)
    while tb > 8 and (n_pad % tb or vmem_bytes(tb) > budget):
        tb -= 8
    return tb, tn


def gat_conv_pallas(x, mask, w, att_cat, bias_row, *, apply_relu=True,
                    negative_slope=0.2):
    """One single-head GATConv layer with fused bias + trailing ReLU.

    x:        [n_pad, f_in_pad] f32     mask:    [n_pad, n_pad] bf16 (0/-1e9)
    w:        [f_in_pad, f_pad] f32     att_cat: [f_pad, f_pad] f32
    bias_row: [1, f_pad]        f32     returns: [n_pad, f_pad] f32
    """
    n_pad, f_in_pad = x.shape
    f_pad = w.shape[1]
    tb, tn = _pick_tiles(n_pad)

    # ---- Pass 1: projection + fused attention logits (lane-dense outputs).
    proj_cost = pl.CostEstimate(
        flops=int(2 * n_pad * f_in_pad * f_pad + 2 * n_pad * f_pad * f_pad),
        transcendentals=0,
        bytes_accessed=int(4 * (n_pad * f_in_pad + f_in_pad * f_pad
                                + f_pad * f_pad + n_pad * f_pad)
                           + 2 * n_pad * f_pad))
    h, a_cat = pl.pallas_call(
        _project_kernel,
        out_shape=(jax.ShapeDtypeStruct((n_pad, f_pad), jnp.bfloat16),
                   jax.ShapeDtypeStruct((n_pad, f_pad), jnp.float32)),
        grid=(n_pad // tb,),
        in_specs=[pl.BlockSpec((tb, f_in_pad), lambda i: (i, 0)),
                  pl.BlockSpec((f_in_pad, f_pad), lambda i: (0, 0)),   # resident
                  pl.BlockSpec((f_pad, f_pad), lambda i: (0, 0))],     # resident
        out_specs=(pl.BlockSpec((tb, f_pad), lambda i: (i, 0)),
                   pl.BlockSpec((tb, f_pad), lambda i: (i, 0))),
        compiler_params=pltpu.CompilerParams(
            dimension_semantics=("parallel",),
            vmem_limit_bytes=_VMEM_LIMIT),
        cost_estimate=proj_cost,
    )(x, w, att_cat)

    # Tiny layout glue (O(N) data): a_src as a lane-dense [1, n_pad] row.
    a_src_row = a_cat[:, 0].reshape(1, n_pad)

    # ---- Pass 2: online-softmax attention + aggregation + bias + ReLU.
    attn_cost = pl.CostEstimate(
        flops=int(2 * n_pad * n_pad * f_pad + 10 * n_pad * n_pad),
        transcendentals=int(n_pad * n_pad),
        bytes_accessed=int(2 * n_pad * n_pad
                           + (n_pad // tb) * n_pad * f_pad * 2
                           + 8 * n_pad * f_pad))
    out = pl.pallas_call(
        functools.partial(_attn_kernel, apply_relu=apply_relu,
                          negative_slope=negative_slope),
        out_shape=jax.ShapeDtypeStruct((n_pad, f_pad), jnp.float32),
        grid=(n_pad // tb, n_pad // tn),
        in_specs=[
            pl.BlockSpec((tb, tn), lambda i, k: (i, k)),       # additive mask
            pl.BlockSpec((tb, f_pad), lambda i, k: (i, 0)),    # a_cat (a_dst)
            pl.BlockSpec((tn, f_pad), lambda i, k: (k, 0)),    # H source tile
            pl.BlockSpec((1, tn), lambda i, k: (0, k)),        # a_src row slice
            pl.BlockSpec((1, f_pad), lambda i, k: (0, 0)),     # bias (resident)
        ],
        out_specs=pl.BlockSpec((tb, f_pad), lambda i, k: (i, 0)),
        scratch_shapes=[pltpu.VMEM((tb, 1), jnp.float32),      # running max
                        pltpu.VMEM((tb, 1), jnp.float32),      # running denom
                        pltpu.VMEM((tb, f_pad), jnp.float32)], # accumulator
        compiler_params=pltpu.CompilerParams(
            dimension_semantics=("parallel", "arbitrary"),
            vmem_limit_bytes=_VMEM_LIMIT),
        cost_estimate=attn_cost,
    )(mask, a_cat, h, a_src_row, bias_row)
    return out


# ------------------------------------------------------------------ glue

def _pad2d(a, rows, cols):
    out = jnp.zeros((rows, cols), a.dtype)
    return out.at[:a.shape[0], :a.shape[1]].set(a)


def _build_att_cat(att_src, att_dst, f_pad):
    a = jnp.zeros((f_pad, f_pad), jnp.float32)
    a = a.at[:att_src.shape[0], 0].set(att_src[:, 0])
    a = a.at[:att_dst.shape[0], 1].set(att_dst[:, 0])
    return a


def build_additive_mask(edge_index, num_nodes, n_pad):
    """edge_index [2, E] (src, dst) -> bf16 additive mask with self loops.
    mask[i, j] = 0 iff there is an edge j -> i (or i == j, i < num_nodes),
    else -1e9.  Padded rows/columns stay fully masked."""
    src, dst = edge_index[0], edge_index[1]
    mask = jnp.full((n_pad, n_pad), _NEG_INF, jnp.float32)
    mask = mask.at[dst, src].set(0.0)
    idx = jnp.arange(num_nodes)
    mask = mask.at[idx, idx].set(0.0)
    return mask.astype(jnp.bfloat16)


def gat_forward(x, edge_index, params):
    n, f_in = x.shape
    h_feats = params["w1"].shape[1]
    num_classes = params["w2"].shape[1]
    n_pad = _round_up(n, _LANES)
    f_in_pad = _round_up(f_in, _LANES)
    f_pad = _round_up(max(h_feats, num_classes), _LANES)

    mask = build_additive_mask(edge_index, n, n_pad)

    x_pad = _pad2d(x, n_pad, f_in_pad)
    w1 = _pad2d(params["w1"], f_in_pad, f_pad)
    att1 = _build_att_cat(params["att_src1"], params["att_dst1"], f_pad)
    b1 = _pad2d(params["b1"].reshape(1, -1), 1, f_pad)

    w2 = _pad2d(params["w2"], f_pad, f_pad)
    att2 = _build_att_cat(params["att_src2"], params["att_dst2"], f_pad)
    b2 = _pad2d(params["b2"].reshape(1, -1), 1, f_pad)

    h1 = gat_conv_pallas(x_pad, mask, w1, att1, b1, apply_relu=True)
    out = gat_conv_pallas(h1, mask, w2, att2, b2, apply_relu=True)
    # TODO(synk): F.dropout(x) (train-mode random mask) has no deterministic
    # equivalent; applied as identity (inference semantics).
    return out[:n, :num_classes]


# ------------------------------------------------------------------ reference

def _gat_conv_ref(x, adj, w, att_src, att_dst, bias, negative_slope=0.2):
    h = x @ w
    a_src = h @ att_src                      # [N, 1]
    a_dst = h @ att_dst                      # [N, 1]
    s = a_dst + a_src.T                      # s[i, j] = a_dst[i] + a_src[j]
    s = jnp.where(s > 0, s, negative_slope * s)
    s = jnp.where(adj > 0, s, _NEG_INF)
    attn = jax.nn.softmax(s, axis=-1)
    return attn @ h + bias.reshape(1, -1)


def build_dense_adj(edge_index, num_nodes):
    src, dst = edge_index[0], edge_index[1]
    adj = jnp.zeros((num_nodes, num_nodes), jnp.float32)
    adj = adj.at[dst, src].set(1.0)
    adj = adj + jnp.eye(num_nodes, dtype=jnp.float32)
    return (adj > 0).astype(jnp.float32)


def gat_forward_ref(x, edge_index, params):
    adj = build_dense_adj(edge_index, x.shape[0])
    h = jax.nn.relu(_gat_conv_ref(x, adj, params["w1"], params["att_src1"],
                                  params["att_dst1"], params["b1"]))
    out = jax.nn.relu(_gat_conv_ref(h, adj, params["w2"], params["att_src2"],
                                    params["att_dst2"], params["b2"]))
    return out


# ------------------------------------------------------------------ demo

if __name__ == "__main__":
    # Small shapes: num_nodes=64, in_feats=16, h_feats=32, num_classes=8.
    num_nodes = 64
    in_feats = 16
    h_feats = 32
    num_classes = 8
    num_edges = 256

    key = jax.random.PRNGKey(0)
    (k_x, k_e1, k_e2, k_w1, k_a1s, k_a1d, k_b1,
     k_w2, k_a2s, k_a2d, k_b2) = jax.random.split(key, 11)

    x = jax.random.normal(k_x, (num_nodes, in_feats), jnp.float32)
    src = jax.random.randint(k_e1, (num_edges,), 0, num_nodes, jnp.int32)
    dst = jax.random.randint(k_e2, (num_edges,), 0, num_nodes, jnp.int32)
    edge_index = jnp.stack([src, dst], axis=0)                 # [2, E]

    def glorot(k, shape):
        fan_in, fan_out = shape[0], shape[-1]
        lim = jnp.sqrt(6.0 / (fan_in + fan_out))
        return jax.random.uniform(k, shape, jnp.float32, -lim, lim)

    params = {
        "w1": glorot(k_w1, (in_feats, h_feats)),
        "att_src1": glorot(k_a1s, (h_feats, 1)),
        "att_dst1": glorot(k_a1d, (h_feats, 1)),
        "b1": jnp.zeros((h_feats,), jnp.float32) + 0.01 * jax.random.normal(
            k_b1, (h_feats,), jnp.float32),
        "w2": glorot(k_w2, (h_feats, num_classes)),
        "att_src2": glorot(k_a2s, (num_classes, 1)),
        "att_dst2": glorot(k_a2d, (num_classes, 1)),
        "b2": jnp.zeros((num_classes,), jnp.float32) + 0.01 * jax.random.normal(
            k_b2, (num_classes,), jnp.float32),
    }

    out = gat_forward(x, edge_index, params)
    out = jax.block_until_ready(out)

    ref = gat_forward_ref(x, edge_index, params)
    assert out.shape == (num_nodes, num_classes)
    assert bool(jnp.all(jnp.isfinite(out)))
    # bf16 H storage / bf16 attention-prob MXU operands and the approximate
    # EUP reciprocal trade a little precision for throughput -> relaxed tol.
    assert jnp.allclose(out, ref, atol=5e-2, rtol=5e-2)

    print("KERNEL_OK")
</pallas_src>

<mosaic_0001>
module attributes {stable_mosaic.version = 11 : i64} {
  func.func @_project_kernel(%arg0: i32, %arg1: memref<128x128xf32, #tpu.memory_space<vmem>>, %arg2: memref<128x128xf32, #tpu.memory_space<vmem>>, %arg3: memref<128x128xf32, #tpu.memory_space<vmem>>, %arg4: memref<128x128xbf16, #tpu.memory_space<vmem>>, %arg5: memref<128x128xf32, #tpu.memory_space<vmem>>) attributes {dimension_semantics = [#tpu.dimension_semantics<parallel>], iteration_bounds = array<i64: 1>, scalar_prefetch = 0 : i64, scratch_operands = 0 : i64, tpu.core_type = #tpu.core_type<tc>, window_params = [{transform_indices = @transform_0, window_bounds = array<i64: 128, 128>}, {pipeline_mode = #tpu.pipeline_mode<synchronous>, transform_indices = @transform_1, window_bounds = array<i64: 128, 128>}, {pipeline_mode = #tpu.pipeline_mode<synchronous>, transform_indices = @transform_2, window_bounds = array<i64: 128, 128>}, {transform_indices = @transform_3, window_bounds = array<i64: 128, 128>}, {transform_indices = @transform_4, window_bounds = array<i64: 128, 128>}]} {
    %c0 = arith.constant 0 : index
    %c0_0 = arith.constant 0 : index
    %0 = vector.load %arg1[%c0, %c0_0] : memref<128x128xf32, #tpu.memory_space<vmem>>, vector<128x128xf32>
    %c0_1 = arith.constant 0 : index
    %c0_2 = arith.constant 0 : index
    %1 = vector.load %arg2[%c0_1, %c0_2] : memref<128x128xf32, #tpu.memory_space<vmem>>, vector<128x128xf32>
    %cst = arith.constant dense<0.000000e+00> : vector<128x128xf32>
    %2 = tpu.matmul %0, %1, %cst {dimension_numbers = #tpu.dot_dimension_numbers<[1], [0], [0], [1], [0, 0, 1, 1], [], []>} : vector<128x128xf32>, vector<128x128xf32>, vector<128x128xf32> -> vector<128x128xf32>
    %3 = arith.truncf %2 : vector<128x128xf32> to vector<128x128xbf16>
    %c0_3 = arith.constant 0 : index
    %c0_4 = arith.constant 0 : index
    %4 = vector.load %arg4[%c0_3, %c0_4] : memref<128x128xbf16, #tpu.memory_space<vmem>>, vector<128x128xbf16>
    tpu.vector_store %arg4[%c0_3, %c0_4], %3 {strides = array<i32>} : memref<128x128xbf16, #tpu.memory_space<vmem>>, vector<128x128xbf16>,
    %c0_5 = arith.constant 0 : index
    %c0_6 = arith.constant 0 : index
    %5 = vector.load %arg3[%c0_5, %c0_6] : memref<128x128xf32, #tpu.memory_space<vmem>>, vector<128x128xf32>
    %cst_7 = arith.constant dense<0.000000e+00> : vector<128x128xf32>
    %6 = tpu.matmul %2, %5, %cst_7 {dimension_numbers = #tpu.dot_dimension_numbers<[1], [0], [0], [1], [0, 0, 1, 1], [], []>} : vector<128x128xf32>, vector<128x128xf32>, vector<128x128xf32> -> vector<128x128xf32>
    %c0_8 = arith.constant 0 : index
    %c0_9 = arith.constant 0 : index
    %7 = vector.load %arg5[%c0_8, %c0_9] : memref<128x128xf32, #tpu.memory_space<vmem>>, vector<128x128xf32>
    tpu.vector_store %arg5[%c0_8, %c0_9], %6 {strides = array<i32>} : memref<128x128xf32, #tpu.memory_space<vmem>>, vector<128x128xf32>,
    return
  }
  func.func @transform_0(%arg0: i32) -> (i32, i32) {
    %c0_i32 = arith.constant 0 : i32
    %c0_i32_0 = arith.constant 0 : i32
    return %arg0, %c0_i32 : i32, i32
  }
  func.func @transform_1(%arg0: i32) -> (i32, i32) {
    %c0_i32 = arith.constant 0 : i32
    %c0_i32_0 = arith.constant 0 : i32
    %c0_i32_1 = arith.constant 0 : i32
    return %c0_i32, %c0_i32_0 : i32, i32
  }
  func.func @transform_2(%arg0: i32) -> (i32, i32) {
    %c0_i32 = arith.constant 0 : i32
    %c0_i32_0 = arith.constant 0 : i32
    %c0_i32_1 = arith.constant 0 : i32
    return %c0_i32, %c0_i32_0 : i32, i32
  }
  func.func @transform_3(%arg0: i32) -> (i32, i32) {
    %c0_i32 = arith.constant 0 : i32
    %c0_i32_0 = arith.constant 0 : i32
    return %arg0, %c0_i32 : i32, i32
  }
  func.func @transform_4(%arg0: i32) -> (i32, i32) {
    %c0_i32 = arith.constant 0 : i32
    %c0_i32_0 = arith.constant 0 : i32
    return %arg0, %c0_i32 : i32, i32
  }
}

</mosaic_0001>

<llo_original>
// kernel: tpu_custom_call.1
$region0: #{tpu_custom_call.1}
  #allocation0 [shape = 'u32[]', space=smem, size = 0x4, offset = 0x4, fixed_abs, tag = 'smem constant byte address 0x4 - core index']
  #allocation1 [shape = 'u32[144,128]{1,0:T(1,128)}', space=vmem, size = 0x12000, scoped, tag = 'internal scratch']
  %s0 = inlined_call_operand.hbm [shape: f32[128,128], index: 0, kind: input, shape index: {}]
  %s1 = inlined_call_operand.hbm [shape: f32[128,128], index: 1, kind: input, shape index: {}]
  %s2 = inlined_call_operand.hbm [shape: f32[128,128], index: 2, kind: input, shape index: {}]
  %s3 = inlined_call_operand.hbm [shape: bf16[128,128], index: 3, kind: output, shape index: {0}]
  %s4 = inlined_call_operand.hbm [shape: f32[128,128], index: 4, kind: output, shape index: {1}]
  %5 = xla_tuple %s3, %s4
  %s6 = sld [smem:[#allocation0]]
  $region42: #{tpu_custom_call.1} parent=0
    _
  %s8 = ssub.s32 1, %s6
  %s9 = scalar_select 0, %s8, %s6
  $region1: #{tpu_custom_call.1} parent=0
    #allocation2 [shape = 'u8[65536]{0}', space=vmem, size = 0x10000, scoped, tag = 'input window, operand 0, single buffered']
    #allocation3 [shape = 's32[1]{0}', space=sflag, size = 0x4, scoped, tag = 'scoped memory for tpu_custom_call.1']
    #allocation4 [shape = 's32[1]{0}', space=sflag, size = 0x4, scoped, tag = 'scoped memory for tpu_custom_call.1']
    #allocation5 [shape = 'u8[65536]{0}', space=vmem, size = 0x10000, scoped, tag = 'input window, operand 1, single buffered']
    #allocation6 [shape = 's32[1]{0}', space=sflag, size = 0x4, scoped, tag = 'scoped memory for tpu_custom_call.1']
    #allocation7 [shape = 'u8[65536]{0}', space=vmem, size = 0x10000, scoped, tag = 'input window, operand 2, single buffered']
    #allocation8 [shape = 'u8[32768]{0}', space=vmem, size = 0x8000, scoped, tag = 'output window, operand 0, single buffered']
    #allocation9 [shape = 'u8[65536]{0}', space=vmem, size = 0x10000, scoped, tag = 'output window, operand 1, single buffered']
    #allocation10 [shape = 's32[1]{0}', space=sflag, size = 0x4, scoped, tag = 'scoped memory for tpu_custom_call.1']
    %10 = vsyncpa [#allocation3], 0
    %11 = vsyncpa [#allocation6], 0
    %12 = vsyncpa [#allocation4], 0
    %13 = vsyncpa [#allocation10], 0
    // Predicated region
    $region2: #{tpu_custom_call.1} parent=1 // pred_check
      _
    $region3: #{tpu_custom_call.1} parent=1 // pred_check_branch
      %15 = sbr.rel (0) target = $region5
    $region4: #{tpu_custom_call.1} parent=1 // pred_region
      %s17 = ssub.s32 2048, 2048
      %18 = vsyncadd [#allocation3], %s17
      %s19 = sshll.u32 [#allocation2], 4
      %s20 = int_to_ptr.vmem [resolvable:$true] %s19
      %25 = dma.hbm_to_vmem [thread:$0]  %s0, 2048, %s20, [#allocation3], 128, 128, 8
    $region5: #{tpu_custom_call.1} parent=1 // pred_fallthru
      _
    // Predicated region
    $region6: #{tpu_custom_call.1} parent=1 // pred_check
      _
    $region7: #{tpu_custom_call.1} parent=1 // pred_check_branch
      %27 = sbr.rel (0) target = $region9
    $region8: #{tpu_custom_call.1} parent=1 // pred_region
      %s29 = ssub.s32 2048, 2048
      %30 = vsyncadd [#allocation6], %s29
      %s31 = sshll.u32 [#allocation5], 4
      %s32 = int_to_ptr.vmem [resolvable:$true] %s31
      %37 = dma.hbm_to_vmem [thread:$0]  %s1, 2048, %s32, [#allocation6], 128, 128, 8
    $region9: #{tpu_custom_call.1} parent=1 // pred_fallthru
      _
    // Predicated region
    $region10: #{tpu_custom_call.1} parent=1 // pred_check
      _
    $region11: #{tpu_custom_call.1} parent=1 // pred_check_branch
      %39 = sbr.rel (0) target = $region13
    $region12: #{tpu_custom_call.1} parent=1 // pred_region
      %s41 = ssub.s32 2048, 2048
      %42 = vsyncadd [#allocation6], %s41
      %s43 = sshll.u32 [#allocation7], 4
      %s44 = int_to_ptr.vmem [resolvable:$true] %s43
      %49 = dma.hbm_to_vmem [thread:$0]  %s2, 2048, %s44, [#allocation6], 128, 128, 8
    $region13: #{tpu_custom_call.1} parent=1 // pred_fallthru
      _
    // Predicated region
    $region14: #{tpu_custom_call.1} parent=1 // pred_check
      _
    $region15: #{tpu_custom_call.1} parent=1 // pred_check_branch
      %51 = sbr.rel (0) target = $region17
    $region16: #{tpu_custom_call.1} parent=1 // pred_region
      %52 = dma.done [#allocation3], 2048
    $region17: #{tpu_custom_call.1} parent=1 // pred_fallthru
      _
    // Predicated region
    $region18: #{tpu_custom_call.1} parent=1 // pred_check
      _
    $region19: #{tpu_custom_call.1} parent=1 // pred_check_branch
      %54 = sbr.rel (0) target = $region21
    $region20: #{tpu_custom_call.1} parent=1 // pred_region
      %55 = dma.done [#allocation6], 2048
    $region21: #{tpu_custom_call.1} parent=1 // pred_fallthru
      _
    // Predicated region
    $region22: #{tpu_custom_call.1} parent=1 // pred_check
      _
    $region23: #{tpu_custom_call.1} parent=1 // pred_check_branch
      %57 = sbr.rel (0) target = $region25
    $region24: #{tpu_custom_call.1} parent=1 // pred_region
      %58 = dma.done [#allocation6], 2048
    $region25: #{tpu_custom_call.1} parent=1 // pred_fallthru
      _
    %v59 = vld [vmem:[#allocation2] sm:$0xff]
    %v60 = vld [vmem:[#allocation2 + $0x8] sm:$0xff]
    %v61 = vld [vmem:[#allocation2 + $0x10] sm:$0xff]
    %v62 = vld [vmem:[#allocation2 + $0x18] sm:$0xff]
    %v63 = vld [vmem:[#allocation2 + $0x20] sm:$0xff]
    %v64 = vld [vmem:[#allocation2 + $0x28] sm:$0xff]
    %v65 = vld [vmem:[#allocation2 + $0x30] sm:$0xff]
    %v66 = vld [vmem:[#allocation2 + $0x38] sm:$0xff]
    %v67 = vld [vmem:[#allocation2 + $0x40] sm:$0xff]
    %v68 = vld [vmem:[#allocation2 + $0x48] sm:$0xff]
    %v69 = vld [vmem:[#allocation2 + $0x50] sm:$0xff]
    %v70 = vld [vmem:[#allocation2 + $0x58] sm:$0xff]
    %v71 = vld [vmem:[#allocation2 + $0x60] sm:$0xff]
    %v72 = vld [vmem:[#allocation2 + $0x68] sm:$0xff]
    %v73 = vld [vmem:[#allocation2 + $0x70] sm:$0xff]
    %v74 = vld [vmem:[#allocation2 + $0x78] sm:$0xff]
    %v75 = vld [vmem:[#allocation5] sm:$0xff]
    %v76 = vld [vmem:[#allocation5 + $0x8] sm:$0xff]
    %v77 = vld [vmem:[#allocation5 + $0x10] sm:$0xff]
    %v78 = vld [vmem:[#allocation5 + $0x18] sm:$0xff]
    %v79 = vld [vmem:[#allocation5 + $0x20] sm:$0xff]
    %v80 = vld [vmem:[#allocation5 + $0x28] sm:$0xff]
    %v81 = vld [vmem:[#allocation5 + $0x30] sm:$0xff]
    %v82 = vld [vmem:[#allocation5 + $0x38] sm:$0xff]
    %v83 = vld [vmem:[#allocation5 + $0x40] sm:$0xff]
    %v84 = vld [vmem:[#allocation5 + $0x48] sm:$0xff]
    %v85 = vld [vmem:[#allocation5 + $0x50] sm:$0xff]
    %v86 = vld [vmem:[#allocation5 + $0x58] sm:$0xff]
    %v87 = vld [vmem:[#allocation5 + $0x60] sm:$0xff]
    %v88 = vld [vmem:[#allocation5 + $0x68] sm:$0xff]
    %v89 = vld [vmem:[#allocation5 + $0x70] sm:$0xff]
    %v90 = vld [vmem:[#allocation5 + $0x78] sm:$0xff]
    %91 = vmatprep.subr.mxu0 0.0
    %92 = vmatpush1.msra.mxu0 %v75
    %93 = vmatprep.subr.mxu0 0.0
    %94 = vmatpush1.msra.mxu0 %v76
    %95 = vmatprep.subr.mxu0 0.0
    %96 = vmatpush1.msra.mxu0 %v77
    %97 = vmatprep.subr.mxu0 0.0
    %98 = vmatpush1.msra.mxu0 %v78
    %99 = vmatprep.subr.mxu0 0.0
    %100 = vmatpush1.msra.mxu0 %v79
    %101 = vmatprep.subr.mxu0 0.0
    %102 = vmatpush1.msra.mxu0 %v80
    %103 = vmatprep.subr.mxu0 0.0
    %104 = vmatpush1.msra.mxu0 %v81
    %105 = vmatprep.subr.mxu0 0.0
    %106 = vmatpush1.msra.mxu0 %v82
    %107 = vmatprep.subr.mxu0 0.0
    %108 = vmatpush1.msra.mxu0 %v83
    %109 = vmatprep.subr.mxu0 0.0
    %110 = vmatpush1.msra.mxu0 %v84
    %111 = vmatprep.subr.mxu0 0.0
    %112 = vmatpush1.msra.mxu0 %v85
    %113 = vmatprep.subr.mxu0 0.0
    %114 = vmatpush1.msra.mxu0 %v86
    %115 = vmatprep.subr.mxu0 0.0
    %116 = vmatpush1.msra.mxu0 %v87
    %117 = vmatprep.subr.mxu0 0.0
    %118 = vmatpush1.msra.mxu0 %v88
    %119 = vmatprep.subr.mxu0 0.0
    %120 = vmatpush1.msra.mxu0 %v89
    %121 = vmatprep.subr.mxu0 0.0
    %122 = vmatpush1.msra.mxu0 %v90
    %123 = vmatprep.subr.mxu0 0.0
    %124 = vmatpush1.msra.mxu0 0.0
    %125 = vmatprep.subr.mxu0 0.0
    %126 = vmatpush1.msra.mxu0 0.0
    %127 = vmatprep.subr.mxu0 0.0
    %128 = vmatpush1.msra.mxu0 0.0
    %129 = vmatprep.subr.mxu0 0.0
    %130 = vmatpush1.msra.mxu0 0.0
    %131 = vmatprep.subr.mxu0 0.0
    %132 = vmatpush1.msra.mxu0 0.0
    %133 = vmatprep.subr.mxu0 0.0
    %134 = vmatpush1.msra.mxu0 0.0
    %135 = vmatprep.subr.mxu0 0.0
    %136 = vmatpush1.msra.mxu0 0.0
    %137 = vmatprep.subr.mxu0 0.0
    %138 = vmatpush1.msra.mxu0 0.0
    %139 = vmatprep.subr.mxu0 0.0
    %140 = vmatpush1.msra.mxu0 0.0
    %141 = vmatprep.subr.mxu0 0.0
    %142 = vmatpush1.msra.mxu0 0.0
    %143 = vmatprep.subr.mxu0 0.0
    %144 = vmatpush1.msra.mxu0 0.0
    %145 = vmatprep.subr.mxu0 0.0
    %146 = vmatpush1.msra.mxu0 0.0
    %147 = vmatprep.subr.mxu0 0.0
    %148 = vmatpush1.msra.mxu0 0.0
    %149 = vmatprep.subr.mxu0 0.0
    %150 = vmatpush1.msra.mxu0 0.0
    %151 = vmatprep.subr.mxu0 0.0
    %152 = vmatpush1.msra.mxu0 0.0
    %153 = vmatprep.subr.mxu0 0.0
    %154 = vmatpush1.msra.mxu0 0.0
    %155 = vmatprep.mubr.f32.mxu0 0.0
    %156 = vmatmul.mubr.f32.gmra.mrb[0].mxu0 %v59
    %v157 = vpop.f32.mrb[0].mxu0
    %v158 = vadd.f32 0.0, %v157
    %v159 = vpop.f32.mrb[0].mxu0
    %160 = vmatprep.mubr.f32.mxu0 0.0
    %161 = vmatmul.mubr.f32.gmra.mrb[0].mxu0 %v60
    %v162 = vpop.f32.mrb[0].mxu0
    %v163 = vadd.f32 0.0, %v162
    %v164 = vpop.f32.mrb[0].mxu0
    %165 = vmatprep.mubr.f32.mxu0 0.0
    %166 = vmatmul.mubr.f32.gmra.mrb[0].mxu0 %v61
    %v167 = vpop.f32.mrb[0].mxu0
    %v168 = vadd.f32 0.0, %v167
    %v169 = vpop.f32.mrb[0].mxu0
    %170 = vmatprep.mubr.f32.mxu0 0.0
    %171 = vmatmul.mubr.f32.gmra.mrb[0].mxu0 %v62
    %v172 = vpop.f32.mrb[0].mxu0
    %v173 = vadd.f32 0.0, %v172
    %v174 = vpop.f32.mrb[0].mxu0
    %175 = vmatprep.mubr.f32.mxu0 0.0
    %176 = vmatmul.mubr.f32.gmra.mrb[0].mxu0 %v63
    %v177 = vpop.f32.mrb[0].mxu0
    %v178 = vadd.f32 0.0, %v177
    %v179 = vpop.f32.mrb[0].mxu0
    %180 = vmatprep.mubr.f32.mxu0 0.0
    %181 = vmatmul.mubr.f32.gmra.mrb[0].mxu0 %v64
    %v182 = vpop.f32.mrb[0].mxu0
    %v183 = vadd.f32 0.0, %v182
    %v184 = vpop.f32.mrb[0].mxu0
    %185 = vmatprep.mubr.f32.mxu0 0.0
    %186 = vmatmul.mubr.f32.gmra.mrb[0].mxu0 %v65
    %v187 = vpop.f32.mrb[0].mxu0
    %v188 = vadd.f32 0.0, %v187
    %v189 = vpop.f32.mrb[0].mxu0
    %190 = vmatprep.mubr.f32.mxu0 0.0
    %191 = vmatmul.mubr.f32.gmra.mrb[0].mxu0 %v66
    %v192 = vpop.f32.mrb[0].mxu0
    %v193 = vadd.f32 0.0, %v192
    %v194 = vpop.f32.mrb[0].mxu0
    %195 = vmatprep.mubr.f32.mxu0 0.0
    %196 = vmatmul.mubr.f32.gmra.mrb[0].mxu0 %v67
    %v197 = vpop.f32.mrb[0].mxu0
    %v198 = vadd.f32 0.0, %v197
    %v199 = vpop.f32.mrb[0].mxu0
    %200 = vmatprep.mubr.f32.mxu0 0.0
    %201 = vmatmul.mubr.f32.gmra.mrb[0].mxu0 %v68
    %v202 = vpop.f32.mrb[0].mxu0
    %v203 = vadd.f32 0.0, %v202
    %v204 = vpop.f32.mrb[0].mxu0
    %205 = vmatprep.mubr.f32.mxu0 0.0
    %206 = vmatmul.mubr.f32.gmra.mrb[0].mxu0 %v69
    %v207 = vpop.f32.mrb[0].mxu0
    %v208 = vadd.f32 0.0, %v207
    %v209 = vpop.f32.mrb[0].mxu0
    %210 = vmatprep.mubr.f32.mxu0 0.0
    %211 = vmatmul.mubr.f32.gmra.mrb[0].mxu0 %v70
    %v212 = vpop.f32.mrb[0].mxu0
    %v213 = vadd.f32 0.0, %v212
    %v214 = vpop.f32.mrb[0].mxu0
    %215 = vmatprep.mubr.f32.mxu0 0.0
    %216 = vmatmul.mubr.f32.gmra.mrb[0].mxu0 %v71
    %v217 = vpop.f32.mrb[0].mxu0
    %v218 = vadd.f32 0.0, %v217
    %v219 = vpop.f32.mrb[0].mxu0
    %220 = vmatprep.mubr.f32.mxu0 0.0
    %221 = vmatmul.mubr.f32.gmra.mrb[0].mxu0 %v72
    %v222 = vpop.f32.mrb[0].mxu0
    %v223 = vadd.f32 0.0, %v222
    %v224 = vpop.f32.mrb[0].mxu0
    %225 = vmatprep.mubr.f32.mxu0 0.0
    %226 = vmatmul.mubr.f32.gmra.mrb[0].mxu0 %v73
    %v227 = vpop.f32.mrb[0].mxu0
    %v228 = vadd.f32 0.0, %v227
    %v229 = vpop.f32.mrb[0].mxu0
    %230 = vmatprep.mubr.f32.mxu0 0.0
    %231 = vmatmul.mubr.f32.gmra.mrb[0].mxu0 %v74
    %v232 = vpop.f32.mrb[0].mxu0
    %v233 = vadd.f32 0.0, %v232
    %v234 = vpop.f32.mrb[0].mxu0
    %235 = vdwg.mxu0
    %v236 = vpack.c.bf16 %v163, %v158
    %v237 = vpack.c.bf16 %v173, %v168
    %v238 = vpack.c.bf16 %v183, %v178
    %v239 = vpack.c.bf16 %v193, %v188
    %v240 = vpack.c.bf16 %v203, %v198
    %v241 = vpack.c.bf16 %v213, %v208
    %v242 = vpack.c.bf16 %v223, %v218
    %v243 = vpack.c.bf16 %v233, %v228
    %v252 = vunpack.c.l.b16 %v236
    %v253 = vunpack.c.h.b16 %v236
    %v254 = vunpack.c.l.b16 %v237
    %v255 = vunpack.c.h.b16 %v237
    %v256 = vunpack.c.l.b16 %v238
    %v257 = vunpack.c.h.b16 %v238
    %v258 = vunpack.c.l.b16 %v239
    %v259 = vunpack.c.h.b16 %v239
    %v260 = vunpack.c.l.b16 %v240
    %v261 = vunpack.c.h.b16 %v240
    %v262 = vunpack.c.l.b16 %v241
    %v263 = vunpack.c.h.b16 %v241
    %v264 = vunpack.c.l.b16 %v242
    %v265 = vunpack.c.h.b16 %v242
    %v266 = vunpack.c.l.b16 %v243
    %v267 = vunpack.c.h.b16 %v243
    %v268 = vpack.c.b16 %v252, %v252
    %v269 = vpack.c.b16 %v253, %v253
    %v270 = vpack.c.b16 %v254, %v254
    %v271 = vpack.c.b16 %v255, %v255
    %v272 = vpack.c.b16 %v256, %v256
    %v273 = vpack.c.b16 %v257, %v257
    %v274 = vpack.c.b16 %v258, %v258
    %v275 = vpack.c.b16 %v259, %v259
    %v276 = vpack.c.b16 %v260, %v260
    %v277 = vpack.c.b16 %v261, %v261
    %v278 = vpack.c.b16 %v262, %v262
    %v279 = vpack.c.b16 %v263, %v263
    %v280 = vpack.c.b16 %v264, %v264
    %v281 = vpack.c.b16 %v265, %v265
    %v282 = vpack.c.b16 %v266, %v266
    %v283 = vpack.c.b16 %v267, %v267
    %300 = vst [vmem:[#allocation8] sm:$0xf] %v268
    %301 = vst [vmem:[#allocation8 + $0x4] sm:$0xf] %v269
    %302 = vst [vmem:[#allocation8 + $0x8] sm:$0xf] %v270
    %303 = vst [vmem:[#allocation8 + $0xc] sm:$0xf] %v271
    %304 = vst [vmem:[#allocation8 + $0x10] sm:$0xf] %v272
    %305 = vst [vmem:[#allocation8 + $0x14] sm:$0xf] %v273
    %306 = vst [vmem:[#allocation8 + $0x18] sm:$0xf] %v274
    %307 = vst [vmem:[#allocation8 + $0x1c] sm:$0xf] %v275
    %308 = vst [vmem:[#allocation8 + $0x20] sm:$0xf] %v276
    %309 = vst [vmem:[#allocation8 + $0x24] sm:$0xf] %v277
    %310 = vst [vmem:[#allocation8 + $0x28] sm:$0xf] %v278
    %311 = vst [vmem:[#allocation8 + $0x2c] sm:$0xf] %v279
    %312 = vst [vmem:[#allocation8 + $0x30] sm:$0xf] %v280
    %313 = vst [vmem:[#allocation8 + $0x34] sm:$0xf] %v281
    %314 = vst [vmem:[#allocation8 + $0x38] sm:$0xf] %v282
    %315 = vst [vmem:[#allocation8 + $0x3c] sm:$0xf] %v283
    %v316 = vld [vmem:[#allocation7] sm:$0xff]
    %v317 = vld [vmem:[#allocation7 + $0x8] sm:$0xff]
    %v318 = vld [vmem:[#allocation7 + $0x10] sm:$0xff]
    %v319 = vld [vmem:[#allocation7 + $0x18] sm:$0xff]
    %v320 = vld [vmem:[#allocation7 + $0x20] sm:$0xff]
    %v321 = vld [vmem:[#allocation7 + $0x28] sm:$0xff]
    %v322 = vld [vmem:[#allocation7 + $0x30] sm:$0xff]
    %v323 = vld [vmem:[#allocation7 + $0x38] sm:$0xff]
    %v324 = vld [vmem:[#allocation7 + $0x40] sm:$0xff]
    %v325 = vld [vmem:[#allocation7 + $0x48] sm:$0xff]
    %v326 = vld [vmem:[#allocation7 + $0x50] sm:$0xff]
    %v327 = vld [vmem:[#allocation7 + $0x58] sm:$0xff]
    %v328 = vld [vmem:[#allocation7 + $0x60] sm:$0xff]
    %v329 = vld [vmem:[#allocation7 + $0x68] sm:$0xff]
    %v330 = vld [vmem:[#allocation7 + $0x70] sm:$0xff]
    %v331 = vld [vmem:[#allocation7 + $0x78] sm:$0xff]
    %332 = vmatprep.subr.mxu0 0.0
    %333 = vmatpush1.msra.mxu0 %v316
    %334 = vmatprep.subr.mxu0 0.0
    %335 = vmatpush1.msra.mxu0 %v317
    %336 = vmatprep.subr.mxu0 0.0
    %337 = vmatpush1.msra.mxu0 %v318
    %338 = vmatprep.subr.mxu0 0.0
    %339 = vmatpush1.msra.mxu0 %v319
    %340 = vmatprep.subr.mxu0 0.0
    %341 = vmatpush1.msra.mxu0 %v320
    %342 = vmatprep.subr.mxu0 0.0
    %343 = vmatpush1.msra.mxu0 %v321
    %344 = vmatprep.subr.mxu0 0.0
    %345 = vmatpush1.msra.mxu0 %v322
    %346 = vmatprep.subr.mxu0 0.0
    %347 = vmatpush1.msra.mxu0 %v323
    %348 = vmatprep.subr.mxu0 0.0
    %349 = vmatpush1.msra.mxu0 %v324
    %350 = vmatprep.subr.mxu0 0.0
    %351 = vmatpush1.msra.mxu0 %v325
    %352 = vmatprep.subr.mxu0 0.0
    %353 = vmatpush1.msra.mxu0 %v326
    %354 = vmatprep.subr.mxu0 0.0
    %355 = vmatpush1.msra.mxu0 %v327
    %356 = vmatprep.subr.mxu0 0.0
    %357 = vmatpush1.msra.mxu0 %v328
    %358 = vmatprep.subr.mxu0 0.0
    %359 = vmatpush1.msra.mxu0 %v329
    %360 = vmatprep.subr.mxu0 0.0
    %361 = vmatpush1.msra.mxu0 %v330
    %362 = vmatprep.subr.mxu0 0.0
    %363 = vmatpush1.msra.mxu0 %v331
    %364 = vmatprep.subr.mxu0 0.0
    %365 = vmatpush1.msra.mxu0 0.0
    %366 = vmatprep.subr.mxu0 0.0
    %367 = vmatpush1.msra.mxu0 0.0
    %368 = vmatprep.subr.mxu0 0.0
    %369 = vmatpush1.msra.mxu0 0.0
    %370 = vmatprep.subr.mxu0 0.0
    %371 = vmatpush1.msra.mxu0 0.0
    %372 = vmatprep.subr.mxu0 0.0
    %373 = vmatpush1.msra.mxu0 0.0
    %374 = vmatprep.subr.mxu0 0.0
    %375 = vmatpush1.msra.mxu0 0.0
    %376 = vmatprep.subr.mxu0 0.0
    %377 = vmatpush1.msra.mxu0 0.0
    %378 = vmatprep.subr.mxu0 0.0
    %379 = vmatpush1.msra.mxu0 0.0
    %380 = vmatprep.subr.mxu0 0.0
    %381 = vmatpush1.msra.mxu0 0.0
    %382 = vmatprep.subr.mxu0 0.0
    %383 = vmatpush1.msra.mxu0 0.0
    %384 = vmatprep.subr.mxu0 0.0
    %385 = vmatpush1.msra.mxu0 0.0
    %386 = vmatprep.subr.mxu0 0.0
    %387 = vmatpush1.msra.mxu0 0.0
    %388 = vmatprep.subr.mxu0 0.0
    %389 = vmatpush1.msra.mxu0 0.0
    %390 = vmatprep.subr.mxu0 0.0
    %391 = vmatpush1.msra.mxu0 0.0
    %392 = vmatprep.subr.mxu0 0.0
    %393 = vmatpush1.msra.mxu0 0.0
    %394 = vmatprep.subr.mxu0 0.0
    %395 = vmatpush1.msra.mxu0 0.0
    %396 = vmatprep.mubr.f32.mxu0 0.0
    %397 = vmatmul.mubr.f32.gmra.mrb[0].mxu0 %v158
    %v398 = vpop.f32.mrb[0].mxu0
    %v399 = vadd.f32 0.0, %v398
    %v400 = vpop.f32.mrb[0].mxu0
    %401 = vmatprep.mubr.f32.mxu0 0.0
    %402 = vmatmul.mubr.f32.gmra.mrb[0].mxu0 %v163
    %v403 = vpop.f32.mrb[0].mxu0
    %v404 = vadd.f32 0.0, %v403
    %v405 = vpop.f32.mrb[0].mxu0
    %406 = vmatprep.mubr.f32.mxu0 0.0
    %407 = vmatmul.mubr.f32.gmra.mrb[0].mxu0 %v168
    %v408 = vpop.f32.mrb[0].mxu0
    %v409 = vadd.f32 0.0, %v408
    %v410 = vpop.f32.mrb[0].mxu0
    %411 = vmatprep.mubr.f32.mxu0 0.0
    %412 = vmatmul.mubr.f32.gmra.mrb[0].mxu0 %v173
    %v413 = vpop.f32.mrb[0].mxu0
    %v414 = vadd.f32 0.0, %v413
    %v415 = vpop.f32.mrb[0].mxu0
    %416 = vmatprep.mubr.f32.mxu0 0.0
    %417 = vmatmul.mubr.f32.gmra.mrb[0].mxu0 %v178
    %v418 = vpop.f32.mrb[0].mxu0
    %v419 = vadd.f32 0.0, %v418
    %v420 = vpop.f32.mrb[0].mxu0
    %421 = vmatprep.mubr.f32.mxu0 0.0
    %422 = vmatmul.mubr.f32.gmra.mrb[0].mxu0 %v183
    %v423 = vpop.f32.mrb[0].mxu0
    %v424 = vadd.f32 0.0, %v423
    %v425 = vpop.f32.mrb[0].mxu0
    %426 = vmatprep.mubr.f32.mxu0 0.0
    %427 = vmatmul.mubr.f32.gmra.mrb[0].mxu0 %v188
    %v428 = vpop.f32.mrb[0].mxu0
    %v429 = vadd.f32 0.0, %v428
    %v430 = vpop.f32.mrb[0].mxu0
    %431 = vmatprep.mubr.f32.mxu0 0.0
    %432 = vmatmul.mubr.f32.gmra.mrb[0].mxu0 %v193
    %v433 = vpop.f32.mrb[0].mxu0
    %v434 = vadd.f32 0.0, %v433
    %v435 = vpop.f32.mrb[0].mxu0
    %436 = vmatprep.mubr.f32.mxu0 0.0
    %437 = vmatmul.mubr.f32.gmra.mrb[0].mxu0 %v198
    %v438 = vpop.f32.mrb[0].mxu0
    %v439 = vadd.f32 0.0, %v438
    %v440 = vpop.f32.mrb[0].mxu0
    %441 = vmatprep.mubr.f32.mxu0 0.0
    %442 = vmatmul.mubr.f32.gmra.mrb[0].mxu0 %v203
    %v443 = vpop.f32.mrb[0].mxu0
    %v444 = vadd.f32 0.0, %v443
    %v445 = vpop.f32.mrb[0].mxu0
    %446 = vmatprep.mubr.f32.mxu0 0.0
    %447 = vmatmul.mubr.f32.gmra.mrb[0].mxu0 %v208
    %v448 = vpop.f32.mrb[0].mxu0
    %v449 = vadd.f32 0.0, %v448
    %v450 = vpop.f32.mrb[0].mxu0
    %451 = vmatprep.mubr.f32.mxu0 0.0
    %452 = vmatmul.mubr.f32.gmra.mrb[0].mxu0 %v213
    %v453 = vpop.f32.mrb[0].mxu0
    %v454 = vadd.f32 0.0, %v453
    %v455 = vpop.f32.mrb[0].mxu0
    %456 = vmatprep.mubr.f32.mxu0 0.0
    %457 = vmatmul.mubr.f32.gmra.mrb[0].mxu0 %v218
    %v458 = vpop.f32.mrb[0].mxu0
    %v459 = vadd.f32 0.0, %v458
    %v460 = vpop.f32.mrb[0].mxu0
    %461 = vmatprep.mubr.f32.mxu0 0.0
    %462 = vmatmul.mubr.f32.gmra.mrb[0].mxu0 %v223
    %v463 = vpop.f32.mrb[0].mxu0
    %v464 = vadd.f32 0.0, %v463
    %v465 = vpop.f32.mrb[0].mxu0
    %466 = vmatprep.mubr.f32.mxu0 0.0
    %467 = vmatmul.mubr.f32.gmra.mrb[0].mxu0 %v228
    %v468 = vpop.f32.mrb[0].mxu0
    %v469 = vadd.f32 0.0, %v468
    %v470 = vpop.f32.mrb[0].mxu0
    %471 = vmatprep.mubr.f32.mxu0 0.0
    %472 = vmatmul.mubr.f32.gmra.mrb[0].mxu0 %v233
    %v473 = vpop.f32.mrb[0].mxu0
    %v474 = vadd.f32 0.0, %v473
    %v475 = vpop.f32.mrb[0].mxu0
    %476 = vdwg.mxu0
    %477 = vst [vmem:[#allocation9] sm:$0xff] %v399
    %478 = vst [vmem:[#allocation9 + $0x8] sm:$0xff] %v404
    %479 = vst [vmem:[#allocation9 + $0x10] sm:$0xff] %v409
    %480 = vst [vmem:[#allocation9 + $0x18] sm:$0xff] %v414
    %481 = vst [vmem:[#allocation9 + $0x20] sm:$0xff] %v419
    %482 = vst [vmem:[#allocation9 + $0x28] sm:$0xff] %v424
    %483 = vst [vmem:[#allocation9 + $0x30] sm:$0xff] %v429
    %484 = vst [vmem:[#allocation9 + $0x38] sm:$0xff] %v434
    %485 = vst [vmem:[#allocation9 + $0x40] sm:$0xff] %v439
    %486 = vst [vmem:[#allocation9 + $0x48] sm:$0xff] %v444
    %487 = vst [vmem:[#allocation9 + $0x50] sm:$0xff] %v449
    %488 = vst [vmem:[#allocation9 + $0x58] sm:$0xff] %v454
    %489 = vst [vmem:[#allocation9 + $0x60] sm:$0xff] %v459
    %490 = vst [vmem:[#allocation9 + $0x68] sm:$0xff] %v464
    %491 = vst [vmem:[#allocation9 + $0x70] sm:$0xff] %v469
    %492 = vst [vmem:[#allocation9 + $0x78] sm:$0xff] %v474
    // Predicated region
    $region26: #{tpu_custom_call.1} parent=1 // pred_check
      _
    $region27: #{tpu_custom_call.1} parent=1 // pred_check_branch
      %494 = sbr.rel (0) target = $region29
    $region28: #{tpu_custom_call.1} parent=1 // pred_region
      %s496 = ssub.s32 1024, 1024
      %497 = vsyncadd [#allocation4], %s496
      %s498 = sshll.u32 [#allocation8], 4
      %s499 = int_to_ptr.vmem [resolvable:$true] %s498
      %504 = dma.vmem_to_hbm [thread:$0]  %s499, 1024, %s3, [#allocation4], 64, 64, 4
    $region29: #{tpu_custom_call.1} parent=1 // pred_fallthru
      _
    // Predicated region
    $region30: #{tpu_custom_call.1} parent=1 // pred_check
      _
    $region31: #{tpu_custom_call.1} parent=1 // pred_check_branch
      %506 = sbr.rel (0) target = $region33
    $region32: #{tpu_custom_call.1} parent=1 // pred_region
      %s508 = ssub.s32 2048, 2048
      %509 = vsyncadd [#allocation10], %s508
      %s510 = sshll.u32 [#allocation9], 4
      %s511 = int_to_ptr.vmem [resolvable:$true] %s510
      %516 = dma.vmem_to_hbm [thread:$0]  %s511, 2048, %s4, [#allocation10], 128, 128, 8
    $region33: #{tpu_custom_call.1} parent=1 // pred_fallthru
      _
    // Predicated region
    $region34: #{tpu_custom_call.1} parent=1 // pred_check
      _
    $region35: #{tpu_custom_call.1} parent=1 // pred_check_branch
      %518 = sbr.rel (0) target = $region37
    $region36: #{tpu_custom_call.1} parent=1 // pred_region
      %519 = dma.done [#allocation4], 1024
    $region37: #{tpu_custom_call.1} parent=1 // pred_fallthru
      _
    // Predicated region
    $region38: #{tpu_custom_call.1} parent=1 // pred_check
      _
    $region39: #{tpu_custom_call.1} parent=1 // pred_check_branch
      %521 = sbr.rel (0) target = $region41
    $region40: #{tpu_custom_call.1} parent=1 // pred_region
      %522 = dma.done [#allocation10], 2048
    $region41: #{tpu_custom_call.1} parent=1 // pred_fallthru
      _
    %523 = vsyncpa [#allocation3], 1
    %524 = vsyncpa [#allocation6], 1
    %525 = vsyncpa [#allocation4], 1
    %526 = vsyncpa [#allocation10], 1

</llo_original>
